<compile_context>
chip_gen: v7x
topology: tpu7x:2x2x1
jax: 0.10.0
libtpu: 0.0.40
codegen_flags: <defaults>
</compile_context>

<pallas_src>
import functools

import jax
import jax.numpy as jnp
from jax.experimental import pallas as pl
from jax.experimental.pallas import tpu as pltpu


def _causal_conv1d_kernel(x_ref, w_ref, b_ref, o_ref, *, kernel_size, dilation):
    # x_ref: (1, C_in, L)     one batch element
    # w_ref: (C_out, K*C_in)  flat column index = j*C_in + c  (VMEM-resident)
    # b_ref: (C_out, 1)       bias                            (VMEM-resident)
    # o_ref: (1, C_out, L)
    x = x_ref[0]                                   # (C_in, L)
    c_in, length = x.shape

    # Build the K causally shifted copies (left edge replicated), stacked along
    # sublanes so a single matmul contracts over (tap, in_channel).
    cols = []
    for j in range(kernel_size):
        s = (kernel_size - 1 - j) * dilation       # static shift for this tap
        if s == 0:
            cols.append(x)
        elif s >= length:
            cols.append(jnp.broadcast_to(x[:, 0:1], (c_in, length)))
        else:
            left = jnp.broadcast_to(x[:, 0:1], (c_in, s))
            cols.append(jnp.concatenate([left, x[:, : length - s]], axis=1))
    stacked = jnp.concatenate(cols, axis=0)        # (K*C_in, L)

    y = jnp.dot(w_ref[...], stacked, preferred_element_type=jnp.float32)
    y = y + b_ref[...]                             # broadcast over lanes
    o_ref[0] = y.astype(o_ref.dtype)


def causal_conv1d(x, w, b, *, dilation=1):
    """x: (B, C_in, L); w: (C_out, C_in, K) in PyTorch Conv1d layout; b: (C_out,)."""
    batch, c_in, length = x.shape
    c_out, c_in_w, k = w.shape
    assert c_in_w == c_in

    # Reorder the (tiny) weight once so its columns match the in-kernel im2col
    # row order (flat index j*C_in + c); reshape bias to a 2-D (sublane, lane).
    w2 = jnp.transpose(w, (0, 2, 1)).reshape(c_out, k * c_in)
    b2 = b.reshape(c_out, 1)

    kernel = functools.partial(
        _causal_conv1d_kernel, kernel_size=k, dilation=dilation
    )
    return pl.pallas_call(
        kernel,
        out_shape=jax.ShapeDtypeStruct((batch, c_out, length), x.dtype),
        grid_spec=pltpu.PrefetchScalarGridSpec(
            num_scalar_prefetch=0,
            grid=(batch,),
            in_specs=[
                pl.BlockSpec((1, c_in, length), lambda bb: (bb, 0, 0)),
                # Constant index_maps: weight & bias loaded once, pinned in VMEM.
                pl.BlockSpec((c_out, k * c_in), lambda bb: (0, 0)),
                pl.BlockSpec((c_out, 1), lambda bb: (0, 0)),
            ],
            out_specs=pl.BlockSpec((1, c_out, length), lambda bb: (bb, 0, 0)),
        ),
        compiler_params=pltpu.CompilerParams(
            dimension_semantics=("parallel",),
        ),
    )(x, w2, b2)


def _causal_conv1d_ref(x, w, b, dilation):
    """Pure-JAX reference with identical semantics to the PyTorch module."""
    batch, c_in, length = x.shape
    c_out, _, k = w.shape
    out = jnp.broadcast_to(b[None, :, None], (batch, c_out, length)).astype(jnp.float32)
    t = jnp.arange(length)
    for j in range(k):
        s = (k - 1 - j) * dilation
        idx = jnp.clip(t - s, 0, length - 1)       # left replicate padding
        xs = x[:, :, idx]                          # (B, C_in, L)
        out = out + jnp.einsum("oc,bcl->bol", w[:, :, j], xs)
    return out.astype(x.dtype)


if __name__ == "__main__":
    # Small shapes consistent with CausalConv1d: (batch, in_ch, L) -> (batch, out_ch, L)
    batch, c_in, c_out, length = 2, 4, 8, 128
    kernel_size, dilation = 3, 2

    key = jax.random.PRNGKey(0)
    kx, kw, kb = jax.random.split(key, 3)

    x = jax.random.normal(kx, (batch, c_in, length), dtype=jnp.float32)
    # PyTorch Conv1d-style init bounds: U(-1/sqrt(fan_in), 1/sqrt(fan_in))
    fan_in = c_in * kernel_size
    bound = 1.0 / (fan_in ** 0.5)
    w = jax.random.uniform(kw, (c_out, c_in, kernel_size),
                           minval=-bound, maxval=bound, dtype=jnp.float32)
    b = jax.random.uniform(kb, (c_out,),
                           minval=-bound, maxval=bound, dtype=jnp.float32)

    out = causal_conv1d(x, w, b, dilation=dilation)
    out = jax.block_until_ready(out)

    ref = _causal_conv1d_ref(x, w, b, dilation)
    assert out.shape == (batch, c_out, length)
    assert jnp.allclose(out, ref, atol=1e-5, rtol=1e-5), float(jnp.max(jnp.abs(out - ref)))

    print("KERNEL_OK")
</pallas_src>

<mosaic_0001>
module attributes {stable_mosaic.version = 11 : i64} {
  func.func @_causal_conv1d_kernel(%arg0: i32, %arg1: memref<1x4x128xf32, #tpu.memory_space<vmem>>, %arg2: memref<8x12xf32, #tpu.memory_space<vmem>>, %arg3: memref<8x1xf32, #tpu.memory_space<vmem>>, %arg4: memref<1x8x128xf32, #tpu.memory_space<vmem>>) attributes {dimension_semantics = [#tpu.dimension_semantics<parallel>], iteration_bounds = array<i64: 2>, scalar_prefetch = 0 : i64, scratch_operands = 0 : i64, tpu.core_type = #tpu.core_type<tc>, window_params = [{transform_indices = @transform_0, window_bounds = array<i64: 1, 4, 128>}, {pipeline_mode = #tpu.pipeline_mode<synchronous>, transform_indices = @transform_1, window_bounds = array<i64: 8, 12>}, {pipeline_mode = #tpu.pipeline_mode<synchronous>, transform_indices = @transform_2, window_bounds = array<i64: 8, 1>}, {transform_indices = @transform_3, window_bounds = array<i64: 1, 8, 128>}]} {
    %c0 = arith.constant 0 : index
    %c0_0 = arith.constant 0 : index
    %c0_1 = arith.constant 0 : index
    %0 = vector.load %arg1[%c0, %c0_0, %c0_1] : memref<1x4x128xf32, #tpu.memory_space<vmem>>, vector<1x4x128xf32>
    %1 = vector.shape_cast %0 : vector<1x4x128xf32> to vector<4x128xf32>
    %2 = vector.extract_strided_slice %1 {offsets = [0, 0], sizes = [4, 1], strides = [1, 1]} : vector<4x128xf32> to vector<4x1xf32>
    %3 = vector.shape_cast %2 : vector<4x1xf32> to vector<4x1xf32>
    %4 = vector.broadcast %3 : vector<4x1xf32> to vector<4x4xf32>
    %5 = vector.extract_strided_slice %1 {offsets = [0, 0], sizes = [4, 124], strides = [1, 1]} : vector<4x128xf32> to vector<4x124xf32>
    %6 = tpu.concatenate %4, %5 in 1 : vector<4x4xf32>, vector<4x124xf32> -> vector<4x128xf32>
    %7 = vector.extract_strided_slice %1 {offsets = [0, 0], sizes = [4, 1], strides = [1, 1]} : vector<4x128xf32> to vector<4x1xf32>
    %8 = vector.shape_cast %7 : vector<4x1xf32> to vector<4x1xf32>
    %9 = vector.broadcast %8 : vector<4x1xf32> to vector<4x2xf32>
    %10 = vector.extract_strided_slice %1 {offsets = [0, 0], sizes = [4, 126], strides = [1, 1]} : vector<4x128xf32> to vector<4x126xf32>
    %11 = tpu.concatenate %9, %10 in 1 : vector<4x2xf32>, vector<4x126xf32> -> vector<4x128xf32>
    %12 = tpu.concatenate %6, %11, %1 in 0 : vector<4x128xf32>, vector<4x128xf32>, vector<4x128xf32> -> vector<12x128xf32>
    %c0_2 = arith.constant 0 : index
    %c0_3 = arith.constant 0 : index
    %13 = vector.load %arg2[%c0_2, %c0_3] : memref<8x12xf32, #tpu.memory_space<vmem>>, vector<8x12xf32>
    %cst = arith.constant dense<0.000000e+00> : vector<8x128xf32>
    %14 = tpu.matmul %13, %12, %cst {dimension_numbers = #tpu.dot_dimension_numbers<[1], [0], [0], [1], [0, 0, 1, 1], [], []>} : vector<8x12xf32>, vector<12x128xf32>, vector<8x128xf32> -> vector<8x128xf32>
    %c0_4 = arith.constant 0 : index
    %c0_5 = arith.constant 0 : index
    %15 = vector.load %arg3[%c0_4, %c0_5] : memref<8x1xf32, #tpu.memory_space<vmem>>, vector<8x1xf32>
    %16 = vector.broadcast %15 : vector<8x1xf32> to vector<8x128xf32>
    %17 = arith.addf %14, %16 : vector<8x128xf32>
    %c0_6 = arith.constant 0 : index
    %c0_7 = arith.constant 0 : index
    %c0_8 = arith.constant 0 : index
    %18 = vector.load %arg4[%c0_6, %c0_7, %c0_8] : memref<1x8x128xf32, #tpu.memory_space<vmem>>, vector<1x8x128xf32>
    %19 = vector.shape_cast %18 : vector<1x8x128xf32> to vector<8x128xf32>
    %20 = vector.shape_cast %17 : vector<8x128xf32> to vector<1x8x128xf32>
    tpu.vector_store %arg4[%c0_6, %c0_7, %c0_8], %20 {strides = array<i32>} : memref<1x8x128xf32, #tpu.memory_space<vmem>>, vector<1x8x128xf32>,
    return
  }
  func.func @transform_0(%arg0: i32) -> (i32, i32, i32) {
    %c0_i32 = arith.constant 0 : i32
    %c0_i32_0 = arith.constant 0 : i32
    %c0_i32_1 = arith.constant 0 : i32
    return %arg0, %c0_i32, %c0_i32_0 : i32, i32, i32
  }
  func.func @transform_1(%arg0: i32) -> (i32, i32) {
    %c0_i32 = arith.constant 0 : i32
    %c0_i32_0 = arith.constant 0 : i32
    %c0_i32_1 = arith.constant 0 : i32
    return %c0_i32, %c0_i32_0 : i32, i32
  }
  func.func @transform_2(%arg0: i32) -> (i32, i32) {
    %c0_i32 = arith.constant 0 : i32
    %c0_i32_0 = arith.constant 0 : i32
    %c0_i32_1 = arith.constant 0 : i32
    return %c0_i32, %c0_i32_0 : i32, i32
  }
  func.func @transform_3(%arg0: i32) -> (i32, i32, i32) {
    %c0_i32 = arith.constant 0 : i32
    %c0_i32_0 = arith.constant 0 : i32
    %c0_i32_1 = arith.constant 0 : i32
    return %arg0, %c0_i32, %c0_i32_0 : i32, i32, i32
  }
}

</mosaic_0001>

<llo_original>
// kernel: tpu_custom_call.1
$region0: #{tpu_custom_call.1}
  #allocation0 [shape = 'u32[]', space=smem, size = 0x4, offset = 0x4, fixed_abs, tag = 'smem constant byte address 0x4 - core index']
  #allocation1 [shape = 'u32[144,128]{1,0:T(1,128)}', space=vmem, size = 0x12000, scoped, tag = 'internal scratch']
  %s0 = inlined_call_operand.vmem [shape: f32[2,4,128], index: 0, kind: input, shape index: {}]
  %s1 = inlined_call_operand.hbm [shape: f32[8,12], index: 1, kind: input, shape index: {}]
  %s2 = inlined_call_operand.vmem [shape: f32[8,1], index: 2, kind: input, shape index: {}]
  %s3 = inlined_call_operand.hbm [shape: f32[2,8,128], index: 3, kind: output, shape index: {}]
  %s4 = sld [smem:[#allocation0]]
  $region49: #{tpu_custom_call.1} parent=0
    _
  %s6 = ssub.s32 1, %s4
  %s7 = scalar_select 0, %s6, %s4
  $region1: #{tpu_custom_call.1} parent=0
    #allocation2 [shape = 'u8[4096]{0}', space=vmem, size = 0x1000, scoped, tag = 'input window, operand 1, single buffered']
    #allocation3 [shape = 's32[2]{0}', space=sflag, size = 0x8, scoped, tag = 'scoped memory for tpu_custom_call.1']
    #allocation4 [shape = 's32[2]{0}', space=sflag, size = 0x8, scoped, tag = 'scoped memory for tpu_custom_call.1']
    #allocation5 [shape = 'u8[8192]{0}', space=vmem, size = 0x2000, scoped, tag = 'output window, operand 0']
    %8 = vsyncpa [#allocation3], 0
    %9 = vsyncpa [#allocation4], 0
    %s10 = scalar_lea.sflag [#allocation4], 1
    %11 = vsyncpa %s10, 0
    loop: start=0, step=1, limit=4
    $region2: #{tpu_custom_call.1} parent=1 // loop_pre_header
      _
    $region3: #{tpu_custom_call.1} parent=1 // loop_header
      %s13 = sphi 0, %s17
      %p14 = scmp.ge.s32.totalorder %s13, 4
      %s23 = sphi 0, %s25
      %s26 = sphi 0, %s23
      %s27 = sphi 0, %s26
      %s43 = sphi 0, %s27
      %s47 = sphi 0, %s47
      %s49 = sphi 0, %s47
      %s50 = sphi 0, %s49
      %s64 = sphi 0, %s50
      %s68 = sphi 0, %s68
      %s70 = sphi 0, %s68
      %s71 = sphi 0, %s70
      %s85 = sphi 0, %s71
      %s91 = sphi 0, %s93
      %s94 = sphi 0, %s91
      %s95 = sphi 0, %s94
      %s111 = sphi 0, %s95
    $region4: #{tpu_custom_call.1} parent=1 // loop_header_branch
      %16 = sbr.rel (%p14) target = $region8
    $region5: #{tpu_custom_call.1} parent=1 // loop_body
      %s18 = ssub.s32 %s13, 1
      %s19 = ssub.s32 %s13, 2
      %s20 = sadd.s32 %s13, 1
      %s21 = ssub.s32 %s13, %s20
      %p22 = scmp.eq.s32.totalorder %s21, 0
      %s24 = sadd.s32 %s23, 1
      %s25 = scalar_select %p22, %s23, %s24
      %p28 = pneg %p22
      %p29 = scmp.eq.s32.totalorder %s13, 1
      %p30 = por %p28, %p29
      %p31 = scmp.ne.s32.totalorder %s23, %s26
      %p32 = scmp.eq.s32.totalorder %s13, 0
      %p33 = por %p31, %p32
      %p34 = scmp.ne.s32.totalorder %s23, %s26
      %p35 = scmp.eq.s32.totalorder %s18, 1
      %p36 = por %p34, %p35
      %p37 = scmp.ne.s32.totalorder %s26, %s27
      %p38 = scmp.eq.s32.totalorder %s18, 0
      %p39 = por %p37, %p38
      %p40 = scmp.ne.s32.totalorder %s26, %s27
      %p41 = scmp.eq.s32.totalorder %s19, 1
      %p42 = por %p40, %p41
      %p44 = scmp.ne.s32.totalorder %s27, %s43
      %p45 = scmp.eq.s32.totalorder %s19, 0
      %p46 = por %p44, %p45
      %s48 = sadd.s32 %s47, 1
      %p51 = scmp.eq.s32.totalorder %s13, 1
      %p52 = scmp.ne.s32.totalorder %s47, %s49
      %p53 = scmp.eq.s32.totalorder %s13, 0
      %p54 = por %p52, %p53
      %p55 = scmp.ne.s32.totalorder %s47, %s49
      %p56 = scmp.eq.s32.totalorder %s18, 1
      %p57 = por %p55, %p56
      %p58 = scmp.ne.s32.totalorder %s49, %s50
      %p59 = scmp.eq.s32.totalorder %s18, 0
      %p60 = por %p58, %p59
      %p61 = scmp.ne.s32.totalorder %s49, %s50
      %p62 = scmp.eq.s32.totalorder %s19, 1
      %p63 = por %p61, %p62
      %p65 = scmp.ne.s32.totalorder %s50, %s64
      %p66 = scmp.eq.s32.totalorder %s19, 0
      %p67 = por %p65, %p66
      %s69 = sadd.s32 %s68, 1
      %p72 = scmp.eq.s32.totalorder %s13, 1
      %p73 = scmp.ne.s32.totalorder %s68, %s70
      %p74 = scmp.eq.s32.totalorder %s13, 0
      %p75 = por %p73, %p74
      %p76 = scmp.ne.s32.totalorder %s68, %s70
      %p77 = scmp.eq.s32.totalorder %s18, 1
      %p78 = por %p76, %p77
      %p79 = scmp.ne.s32.totalorder %s70, %s71
      %p80 = scmp.eq.s32.totalorder %s18, 0
      %p81 = por %p79, %p80
      %p82 = scmp.ne.s32.totalorder %s70, %s71
      %p83 = scmp.eq.s32.totalorder %s19, 1
      %p84 = por %p82, %p83
      %p86 = scmp.ne.s32.totalorder %s71, %s85
      %p87 = scmp.eq.s32.totalorder %s19, 0
      %p88 = por %p86, %p87
      %s89 = ssub.s32 %s13, %s20
      %p90 = scmp.eq.s32.totalorder %s89, 0
      %s92 = sadd.s32 %s91, 1
      %s93 = scalar_select %p90, %s91, %s92
      %p96 = pneg %p90
      %p97 = scmp.eq.s32.totalorder %s13, 1
      %p98 = por %p96, %p97
      %p99 = scmp.ne.s32.totalorder %s91, %s94
      %p100 = scmp.eq.s32.totalorder %s13, 0
      %p101 = por %p99, %p100
      %p102 = scmp.ne.s32.totalorder %s91, %s94
      %p103 = scmp.eq.s32.totalorder %s18, 1
      %p104 = por %p102, %p103
      %p105 = scmp.ne.s32.totalorder %s94, %s95
      %p106 = scmp.eq.s32.totalorder %s18, 0
      %p107 = por %p105, %p106
      %p108 = scmp.ne.s32.totalorder %s94, %s95
      %p109 = scmp.eq.s32.totalorder %s19, 1
      %p110 = por %p108, %p109
      %p112 = scmp.ne.s32.totalorder %s95, %s111
      %p113 = scmp.eq.s32.totalorder %s19, 0
      %p114 = por %p112, %p113
      %p115 = scmp.le.s32.totalorder 1, %s13
      %p116 = scmp.lt.s32.totalorder %s13, 3
      %p117 = pnand %p115, %p116
      %p118 = pneg %p117
      // Predicated region
      $region9: #{tpu_custom_call.1} parent=5 // pred_check
        _
      $region10: #{tpu_custom_call.1} parent=5 // pred_check_branch
        %120 = sbr.rel (%p117) target = $region12
      $region11: #{tpu_custom_call.1} parent=5 // pred_region
        %s121 = ssub.s32 %s13, 1
        // Predicated region
        $region13: #{tpu_custom_call.1} parent=11 // pred_check
          %p122 = pneg %p60
        $region14: #{tpu_custom_call.1} parent=11 // pred_check_branch
          %124 = sbr.rel (%p122) target = $region16
        $region15: #{tpu_custom_call.1} parent=11 // pred_region
          %s126 = ssub.s32 128, 128
          %127 = vsyncadd [#allocation3], %s126
          %s129 = sshll.u32 [#allocation2], 4
          %s130 = int_to_ptr.vmem [resolvable:$true] %s129
          %132 = dma.hbm_to_vmem [thread:$0]  %s1, 128, %s130, [#allocation3]
        $region16: #{tpu_custom_call.1} parent=11 // pred_fallthru
          _
        // Predicated region
        $region17: #{tpu_custom_call.1} parent=11 // pred_check
          %p133 = pneg %p81
        $region18: #{tpu_custom_call.1} parent=11 // pred_check_branch
          %135 = sbr.rel (%p133) target = $region20
        $region19: #{tpu_custom_call.1} parent=11 // pred_region
          _
        $region20: #{tpu_custom_call.1} parent=11 // pred_fallthru
          _
      $region12: #{tpu_custom_call.1} parent=5 // pred_fallthru
        _
      %p136 = scmp.lt.s32.totalorder %s13, 2
      // Predicated region
      $region21: #{tpu_custom_call.1} parent=5 // pred_check
        %p137 = pneg %p136
      $region22: #{tpu_custom_call.1} parent=5 // pred_check_branch
        %139 = sbr.rel (%p137) target = $region24
      $region23: #{tpu_custom_call.1} parent=5 // pred_region
        // Predicated region
        $region25: #{tpu_custom_call.1} parent=23 // pred_check
          %p140 = pneg %p33
        $region26: #{tpu_custom_call.1} parent=23 // pred_check_branch
          %142 = sbr.rel (%p140) target = $region28
        $region27: #{tpu_custom_call.1} parent=23 // pred_region
          %p143 = scmp.lt.s32.totalorder %s13, 1
          %s144 = scalar_select %p143, %s13, 1
          %s145 = smul.addr %s144, 4
          %s146 = scalar_lea.vmem %s0, %s145
        $region28: #{tpu_custom_call.1} parent=23 // pred_fallthru
          _
      $region24: #{tpu_custom_call.1} parent=5 // pred_fallthru
        _
      %p147 = scmp.le.s32.totalorder 1, %s13
      %p148 = scmp.lt.s32.totalorder %s13, 3
      %p149 = pnand %p147, %p148
      %p150 = pneg %p149
      // Predicated region
      $region29: #{tpu_custom_call.1} parent=5 // pred_check
        _
      $region30: #{tpu_custom_call.1} parent=5 // pred_check_branch
        %152 = sbr.rel (%p149) target = $region32
      $region31: #{tpu_custom_call.1} parent=5 // pred_region
        %s153 = ssub.s32 %s13, 1
        // Predicated region
        $region33: #{tpu_custom_call.1} parent=31 // pred_check
          %p154 = pneg %p60
        $region34: #{tpu_custom_call.1} parent=31 // pred_check_branch
          %156 = sbr.rel (%p154) target = $region36
        $region35: #{tpu_custom_call.1} parent=31 // pred_region
          %157 = dma.done [#allocation3], 128
        $region36: #{tpu_custom_call.1} parent=31 // pred_fallthru
          _
        %p158 = scmp.lt.s32.totalorder %s18, 1
        %s159 = scalar_select %p158, %s18, 1
        %s160 = smul.addr %s159, 4
        %s161 = scalar_lea.vmem %s0, %s160
        %p162 = pneg %p39
        %p163 = pneg %p36
        %p164 = pneg %p60
        %p165 = pneg %p57
        %p166 = pneg %p81
        %p167 = pneg %p78
        %p168 = pneg %p107
        %p169 = pneg %p104
        %s170 = sand.u32 %s94, 1
        %s171 = scalar_lea.sflag [#allocation4], %s170
        %s172 = sand.u32 %s94, 1
        %s173 = smul.addr %s172, 8
        %s174 = scalar_lea.vmem [#allocation5], %s173
        %p175 = scmp.lt.s32.totalorder %s18, 1
        %s176 = scalar_select %p175, %s18, 1
        %s177 = smul.addr %s176, 4
        %s178 = scalar_lea.vmem %s0, %s177
        %v179 = vld [vmem:[%s178] sm:$0xf]
        %181 = vset.pattern.permute.xlu0 0
        %182 = vperm.xlu0 %181, %v179
        %v183 = vpop.permute.xlu0 %182
        %185 = vrot.lane.b32.xlu0 %v179, 4
        %v186 = vpop.permute.xlu0 %185
        %vm188 = vcmask 31744
        %v189 = vsel %vm188, %v183, %v186
        %190 = vrot.lane.b32.xlu0 %v179, 2
        %v191 = vpop.permute.xlu0 %190
        %vm193 = vcmask 15360
        %v194 = vsel %vm193, %v183, %v191
        %v196 = vrot.slane %v194, 4
        %vm198 = vcmask 1043456
        %v199 = vsel %vm198, %v189, %v196
        %v200 = vld [vmem:[#allocation2] sm:$0xff]
        %v201 = vld [vmem:[%s2] sm:$0xff]
        %203 = vset.pattern.permute.xlu0 0
        %204 = vperm.xlu0 %203, %v201
        %v205 = vpop.permute.xlu0 %204
        %vm207 = vcmask 97280
        %v209 = vsel %vm207, %v200, 0
        %v211 = vsel %vm198, %v179, 0
        %213 = vmatprep.subr.mxu0 0.0
        %214 = vmatpush1.msra.mxu0 %v199
        %215 = vmatprep.subr.mxu0 0.0
        %216 = vmatpush1.msra.mxu0 %v211
        %217 = vmatprep.subr.mxu0 0.0
        %218 = vmatpush1.msra.mxu0 0.0
        %219 = vmatprep.subr.mxu0 0.0
        %220 = vmatpush1.msra.mxu0 0.0
        %221 = vmatprep.subr.mxu0 0.0
        %222 = vmatpush1.msra.mxu0 0.0
        %223 = vmatprep.subr.mxu0 0.0
        %224 = vmatpush1.msra.mxu0 0.0
        %225 = vmatprep.subr.mxu0 0.0
        %226 = vmatpush1.msra.mxu0 0.0
        %227 = vmatprep.subr.mxu0 0.0
        %228 = vmatpush1.msra.mxu0 0.0
        %229 = vmatprep.subr.mxu0 0.0
        %230 = vmatpush1.msra.mxu0 0.0
        %231 = vmatprep.subr.mxu0 0.0
        %232 = vmatpush1.msra.mxu0 0.0
        %233 = vmatprep.subr.mxu0 0.0
        %234 = vmatpush1.msra.mxu0 0.0
        %235 = vmatprep.subr.mxu0 0.0
        %236 = vmatpush1.msra.mxu0 0.0
        %237 = vmatprep.subr.mxu0 0.0
        %238 = vmatpush1.msra.mxu0 0.0
        %239 = vmatprep.subr.mxu0 0.0
        %240 = vmatpush1.msra.mxu0 0.0
        %241 = vmatprep.subr.mxu0 0.0
        %242 = vmatpush1.msra.mxu0 0.0
        %243 = vmatprep.subr.mxu0 0.0
        %244 = vmatpush1.msra.mxu0 0.0
        %245 = vmatprep.subr.mxu0 0.0
        %246 = vmatpush1.msra.mxu0 0.0
        %247 = vmatprep.subr.mxu0 0.0
        %248 = vmatpush1.msra.mxu0 0.0
        %249 = vmatprep.subr.mxu0 0.0
        %250 = vmatpush1.msra.mxu0 0.0
        %251 = vmatprep.subr.mxu0 0.0
        %252 = vmatpush1.msra.mxu0 0.0
        %253 = vmatprep.subr.mxu0 0.0
        %254 = vmatpush1.msra.mxu0 0.0
        %255 = vmatprep.subr.mxu0 0.0
        %256 = vmatpush1.msra.mxu0 0.0
        %257 = vmatprep.subr.mxu0 0.0
        %258 = vmatpush1.msra.mxu0 0.0
        %259 = vmatprep.subr.mxu0 0.0
        %260 = vmatpush1.msra.mxu0 0.0
        %261 = vmatprep.subr.mxu0 0.0
        %262 = vmatpush1.msra.mxu0 0.0
        %263 = vmatprep.subr.mxu0 0.0
        %264 = vmatpush1.msra.mxu0 0.0
        %265 = vmatprep.subr.mxu0 0.0
        %266 = vmatpush1.msra.mxu0 0.0
        %267 = vmatprep.subr.mxu0 0.0
        %268 = vmatpush1.msra.mxu0 0.0
        %269 = vmatprep.subr.mxu0 0.0
        %270 = vmatpush1.msra.mxu0 0.0
        %271 = vmatprep.subr.mxu0 0.0
        %272 = vmatpush1.msra.mxu0 0.0
        %273 = vmatprep.subr.mxu0 0.0
        %274 = vmatpush1.msra.mxu0 0.0
        %275 = vmatprep.subr.mxu0 0.0
        %276 = vmatpush1.msra.mxu0 0.0
        %277 = vmatprep.mubr.f32.mxu0 0.0
        %278 = vmatmul.mubr.f32.gmra.mrb[0].mxu0 %v209
        %v279 = vpop.f32.mrb[0].mxu0
        %v280 = vadd.f32 %v205, %v279
        %v281 = vpop.f32.mrb[0].mxu0
        %282 = vdwg.mxu0
        %283 = vst [vmem:[%s174] sm:$0xff] %v280
        %s284 = sand.u32 %s94, 1
        %s285 = scalar_lea.sflag [#allocation4], %s284
        %s286 = sand.u32 %s94, 1
        %s287 = smul.addr %s286, 8
        %s288 = scalar_lea.vmem [#allocation5], %s287
        // Predicated region
        $region37: #{tpu_custom_call.1} parent=31 // pred_check
          %p289 = pneg %p104
        $region38: #{tpu_custom_call.1} parent=31 // pred_check_branch
          %291 = sbr.rel (%p289) target = $region40
        $region39: #{tpu_custom_call.1} parent=31 // pred_region
          %s293 = ssub.s32 128, 128
          %294 = vsyncadd %s285, %s293
          %s295 = smul.addr %s18, 128
          %s296 = scalar_lea.hbm %s3, %s295
          %s298 = sshll.u32 %s288, 4
          %s299 = int_to_ptr.vmem [resolvable:$true] %s298
          %301 = dma.vmem_to_hbm [thread:$0]  %s299, 128, %s296, %s285
        $region40: #{tpu_custom_call.1} parent=31 // pred_fallthru
          _
      $region32: #{tpu_custom_call.1} parent=5 // pred_fallthru
        _
      %p302 = scmp.le.s32.totalorder 2, %s13
      // Predicated region
      $region41: #{tpu_custom_call.1} parent=5 // pred_check
        %p303 = pneg %p302
      $region42: #{tpu_custom_call.1} parent=5 // pred_check_branch
        %305 = sbr.rel (%p303) target = $region44
      $region43: #{tpu_custom_call.1} parent=5 // pred_region
        %s306 = ssub.s32 %s13, 2
        // Predicated region
        $region45: #{tpu_custom_call.1} parent=43 // pred_check
          %p307 = pneg %p110
        $region46: #{tpu_custom_call.1} parent=43 // pred_check_branch
          %309 = sbr.rel (%p307) target = $region48
        $region47: #{tpu_custom_call.1} parent=43 // pred_region
          %s310 = sand.u32 %s95, 1
          %s311 = scalar_lea.sflag [#allocation4], %s310
          %s312 = sand.u32 %s95, 1
          %s313 = smul.addr %s312, 8
          %s314 = scalar_lea.vmem [#allocation5], %s313
          %315 = dma.done %s311, 128
        $region48: #{tpu_custom_call.1} parent=43 // pred_fallthru
          _
      $region44: #{tpu_custom_call.1} parent=5 // pred_fallthru
        _
    $region6: #{tpu_custom_call.1} parent=1 // loop_footer
      %s17 = sadd.s32 1, %s13
    $region7: #{tpu_custom_call.1} parent=1 // loop_footer_branch
      %12 = sbr.rel target = $region3
    $region8: #{tpu_custom_call.1} parent=1 // loop_exit
      _
    %316 = vsyncpa [#allocation3], 1
    %s317 = scalar_lea.sflag [#allocation3], 1
    %318 = vsyncpa %s317, 1
    %319 = vsyncpa [#allocation4], 1
    %s320 = scalar_lea.sflag [#allocation4], 1
    %321 = vsyncpa %s320, 1

</llo_original>
